<compile_context>
chip_gen: v5e
topology: v5e:2x2
jax: 0.10.0
libtpu: 0.0.40
codegen_flags: <defaults>
</compile_context>

<pallas_src>
import jax
import jax.numpy as jnp
from jax.experimental import pallas as pl
from jax.experimental.pallas import tpu as pltpu


def _linear_embedding_kernel(x_ref, w_ref, b_ref, o_ref):
    # x_ref : (TR, K*P)   tile of packed tokens (P tokens per row)
    # w_ref : (K*P, N*P)  block-diagonal kron(I_P, W.T), resident in VMEM
    # b_ref : (1, N*P)    bias tiled P times, resident in VMEM
    # o_ref : (TR, N*P)   lane-dense output tile
    acc = jnp.dot(x_ref[...], w_ref[...], preferred_element_type=jnp.float32)
    o_ref[...] = (acc + b_ref[...]).astype(o_ref.dtype)


def linear_embedding_sp(x, weight, bias, *, tokens_per_tile=32768,
                        min_tokens_for_pallas=2048, force_pallas=False):
    """x: (B, S, inp_size); weight: (d_model, inp_size); bias: (d_model,)."""
    B, S, K = x.shape
    N = weight.shape[0]
    M = B * S
    out_dtype = x.dtype
    itemsize = jnp.dtype(out_dtype).itemsize

    if (not force_pallas) and M < min_tokens_for_pallas:
        # Small-M fast path: the whole op is a few KB; pallas_call fixed cost
        # dominates, plain XLA (or fusion into the consumer) is strictly faster.
        y = (x.reshape(M, K) @ weight.T + bias).astype(out_dtype)
        return y.reshape(B, S, N)

    # Token packing factor: largest of these that divides M.  P=32 gives a
    # 128-lane-dense input block and a 1024-lane output block.
    P = 1
    for cand in (32, 16, 8, 4, 2):
        if M % cand == 0:
            P = cand
            break
    # TODO(synk): when B*S is not a multiple of 32 the layout is less
    # lane-dense; production callers should keep B*S a multiple of 32.

    R = M // P                     # packed rows
    KP, NP = K * P, N * P

    # Free reshape (same row-major bytes): token p of packed row r lives at
    # x_packed[r, p*K:(p+1)*K] and out_packed[r, p*N:(p+1)*N].
    x_packed = x.reshape(R, KP)
    # Block-diagonal weight in contraction-major orientation (one-time,
    # few-hundred-KB wrapper cost).
    w_packed = jnp.kron(jnp.eye(P, dtype=weight.dtype), weight.T)   # (KP, NP)
    b_packed = jnp.tile(bias, P).reshape(1, NP)

    # Rows per grid step: target `tokens_per_tile` tokens, capped so
    # 2x double-buffered (x tile + out tile) plus the resident packed weight
    # stay within ~12 MiB (fits v5e's 16 MiB default scoped VMEM).
    vmem_budget = 12 * 1024 * 1024 - (KP * NP + NP) * itemsize
    per_row_bytes = 2 * (KP + NP) * itemsize            # 2x: double buffering
    tr = min(tokens_per_tile // P, max(8, vmem_budget // per_row_bytes))
    if tr >= R:
        tr = R                        # single full block (legal for any R)
    else:
        tr = max(8, (tr // 8) * 8)    # sublane-aligned; edge block is clipped

    grid = (pl.cdiv(R, tr),)

    out_packed = pl.pallas_call(
        _linear_embedding_kernel,
        out_shape=jax.ShapeDtypeStruct((R, NP), out_dtype),
        grid=grid,
        in_specs=[
            pl.BlockSpec((tr, KP), lambda i: (i, 0)),   # x tile, pipelined over rows
            pl.BlockSpec((KP, NP), lambda i: (0, 0)),   # packed weight, resident
            pl.BlockSpec((1, NP), lambda i: (0, 0)),    # packed bias, resident
        ],
        out_specs=pl.BlockSpec((tr, NP), lambda i: (i, 0)),
        compiler_params=pltpu.CompilerParams(
            dimension_semantics=("parallel",),          # megacore sharding on v7x
        ),
        cost_estimate=pl.CostEstimate(
            flops=2 * R * KP * NP,
            transcendentals=0,
            bytes_accessed=(R * KP + KP * NP + NP + R * NP) * itemsize,
        ),
    )(x_packed, w_packed, b_packed)

    # (R, N*P) is bit-identical row-major to (M, N): reshape is free.
    return out_packed.reshape(B, S, N)


if __name__ == "__main__":
    INP, DMODEL = 4, 32

    key = jax.random.PRNGKey(0)
    kx, kw, kb, kx2 = jax.random.split(key, 4)

    # Deterministic synthetic parameters (nn.Linear(inp_size, d_model) shapes).
    bound = 1.0 / (INP ** 0.5)
    weight = jax.random.uniform(kw, (DMODEL, INP), jnp.float32, -bound, bound)
    bias = jax.random.uniform(kb, (DMODEL,), jnp.float32, -bound, bound)

    # 1) Module-nominal small shape (batch=2, seq=8, inp_size=4, d_model=32),
    #    forced through the Pallas path so the kernel itself is exercised.
    B, S = 2, 8
    x_small = jax.random.normal(kx, (B, S, INP), dtype=jnp.float32)
    y_small = linear_embedding_sp(x_small, weight, bias, force_pallas=True)
    jax.block_until_ready(y_small)
    ref_small = x_small @ weight.T + bias
    assert y_small.shape == (B, S, DMODEL)
    assert jnp.allclose(y_small, ref_small, atol=1e-5, rtol=1e-5)

    # 2) Moderate shape exercising the packed (P=32), multi-step pipelined grid.
    B2, S2 = 4, 1024
    x_big = jax.random.normal(kx2, (B2, S2, INP), dtype=jnp.float32)
    y_big = linear_embedding_sp(x_big, weight, bias, tokens_per_tile=1024)
    jax.block_until_ready(y_big)
    ref_big = x_big @ weight.T + bias
    assert y_big.shape == (B2, S2, DMODEL)
    assert jnp.allclose(y_big, ref_big, atol=1e-4, rtol=1e-4)

    print("KERNEL_OK")
</pallas_src>

<mosaic_0001>
module attributes {stable_mosaic.version = 11 : i64} {
  func.func @_linear_embedding_kernel(%arg0: i32, %arg1: memref<1x64xf32, #tpu.memory_space<vmem>>, %arg2: memref<64x512xf32, #tpu.memory_space<vmem>>, %arg3: memref<1x512xf32, #tpu.memory_space<vmem>>, %arg4: memref<1x512xf32, #tpu.memory_space<vmem>>) attributes {dimension_semantics = [#tpu.dimension_semantics<parallel>], iteration_bounds = array<i64: 1>, scalar_prefetch = 0 : i64, scratch_operands = 0 : i64, tpu.core_type = #tpu.core_type<tc>, window_params = [{transform_indices = @transform_0, window_bounds = array<i64: 1, 64>}, {pipeline_mode = #tpu.pipeline_mode<synchronous>, transform_indices = @transform_1, window_bounds = array<i64: 64, 512>}, {pipeline_mode = #tpu.pipeline_mode<synchronous>, transform_indices = @transform_2, window_bounds = array<i64: 1, 512>}, {transform_indices = @transform_3, window_bounds = array<i64: 1, 512>}]} {
    %c0 = arith.constant 0 : index
    %c0_0 = arith.constant 0 : index
    %0 = vector.load %arg1[%c0, %c0_0] : memref<1x64xf32, #tpu.memory_space<vmem>>, vector<1x64xf32>
    %c0_1 = arith.constant 0 : index
    %c0_2 = arith.constant 0 : index
    %1 = vector.load %arg2[%c0_1, %c0_2] : memref<64x512xf32, #tpu.memory_space<vmem>>, vector<64x512xf32>
    %cst = arith.constant dense<0.000000e+00> : vector<1x512xf32>
    %2 = tpu.matmul %0, %1, %cst {dimension_numbers = #tpu.dot_dimension_numbers<[1], [0], [0], [1], [0, 0, 1, 1], [], []>} : vector<1x64xf32>, vector<64x512xf32>, vector<1x512xf32> -> vector<1x512xf32>
    %c0_3 = arith.constant 0 : index
    %c0_4 = arith.constant 0 : index
    %3 = vector.load %arg3[%c0_3, %c0_4] : memref<1x512xf32, #tpu.memory_space<vmem>>, vector<1x512xf32>
    %4 = arith.addf %2, %3 : vector<1x512xf32>
    %c0_5 = arith.constant 0 : index
    %c0_6 = arith.constant 0 : index
    %5 = vector.load %arg4[%c0_5, %c0_6] : memref<1x512xf32, #tpu.memory_space<vmem>>, vector<1x512xf32>
    tpu.vector_store %arg4[%c0_5, %c0_6], %4 {strides = array<i32>} : memref<1x512xf32, #tpu.memory_space<vmem>>, vector<1x512xf32>,
    return
  }
  func.func @transform_0(%arg0: i32) -> (i32, i32) {
    %c0_i32 = arith.constant 0 : i32
    %c0_i32_0 = arith.constant 0 : i32
    return %arg0, %c0_i32 : i32, i32
  }
  func.func @transform_1(%arg0: i32) -> (i32, i32) {
    %c0_i32 = arith.constant 0 : i32
    %c0_i32_0 = arith.constant 0 : i32
    %c0_i32_1 = arith.constant 0 : i32
    return %c0_i32, %c0_i32_0 : i32, i32
  }
  func.func @transform_2(%arg0: i32) -> (i32, i32) {
    %c0_i32 = arith.constant 0 : i32
    %c0_i32_0 = arith.constant 0 : i32
    %c0_i32_1 = arith.constant 0 : i32
    return %c0_i32, %c0_i32_0 : i32, i32
  }
  func.func @transform_3(%arg0: i32) -> (i32, i32) {
    %c0_i32 = arith.constant 0 : i32
    %c0_i32_0 = arith.constant 0 : i32
    return %arg0, %c0_i32 : i32, i32
  }
}

</mosaic_0001>

<llo_original>
// kernel: tpu_custom_call.1
$region0: #{tpu_custom_call.1}
  #allocation0 [shape = 'u32[]', space=smem, size = 0x4, offset = 0x4, fixed_abs, tag = 'smem constant byte address 0x4 - core index']
  #allocation1 [shape = 'u32[72,128]{1,0:T(1,128)}', space=vmem, size = 0x9000, scoped, tag = 'internal scratch']
  %s0 = inlined_call_operand.hbm [shape: f32[1,64], index: 0, kind: input, shape index: {}]
  %s1 = inlined_call_operand.hbm [shape: f32[64,512], index: 1, kind: input, shape index: {}]
  %s2 = inlined_call_operand.hbm [shape: f32[1,512], index: 2, kind: input, shape index: {}]
  %s3 = inlined_call_operand.hbm [shape: f32[1,512], index: 3, kind: output, shape index: {}]
  %s4 = sld [smem:[#allocation0]]
  $region34: #{tpu_custom_call.1} parent=0
    _
  %s6 = ssub.s32 1, %s4
  %s7 = scalar_select 0, %s6, %s4
  $region1: #{tpu_custom_call.1} parent=0
    #allocation2 [shape = 'u8[512]{0}', space=vmem, size = 0x400, scoped, tag = 'input window, operand 0, single buffered']
    #allocation3 [shape = 's32[1]{0}', space=sflag, size = 0x4, scoped, tag = 'scoped memory for tpu_custom_call.1']
    #allocation4 [shape = 's32[1]{0}', space=sflag, size = 0x4, scoped, tag = 'scoped memory for tpu_custom_call.1']
    #allocation5 [shape = 'u8[131072]{0}', space=vmem, size = 0x20000, scoped, tag = 'input window, operand 1, single buffered']
    #allocation6 [shape = 's32[1]{0}', space=sflag, size = 0x4, scoped, tag = 'scoped memory for tpu_custom_call.1']
    #allocation7 [shape = 'u8[2048]{0}', space=vmem, size = 0x800, scoped, tag = 'input window, operand 2, single buffered']
    #allocation8 [shape = 'u8[2048]{0}', space=vmem, size = 0x800, scoped, tag = 'output window, operand 0, single buffered']
    %8 = vsyncpa [#allocation3], 0
    %9 = vsyncpa [#allocation6], 0
    %10 = vsyncpa [#allocation4], 0
    // Predicated region
    $region2: #{tpu_custom_call.1} parent=1 // pred_check
      _
    $region3: #{tpu_custom_call.1} parent=1 // pred_check_branch
      %12 = sbr.rel (0) target = $region5
    $region4: #{tpu_custom_call.1} parent=1 // pred_region
      %14 = vsyncadd [#allocation3], 0
      %s16 = sshll.u32 %s0, 4
      %s17 = int_to_ptr.hbm [resolvable:$true] %s16
      %s18 = sshll.u32 [#allocation2], 4
      %s19 = int_to_ptr.vmem [resolvable:$true] %s18
      %21 = dma.hbm_to_vmem [thread:$0]  %s17, 16, %s19, [#allocation3]
    $region5: #{tpu_custom_call.1} parent=1 // pred_fallthru
      _
    // Predicated region
    $region6: #{tpu_custom_call.1} parent=1 // pred_check
      _
    $region7: #{tpu_custom_call.1} parent=1 // pred_check_branch
      %23 = sbr.rel (0) target = $region9
    $region8: #{tpu_custom_call.1} parent=1 // pred_region
      %25 = vsyncadd [#allocation6], 0
      %s26 = sshll.u32 %s1, 4
      %s27 = int_to_ptr.hbm [resolvable:$true] %s26
      %s28 = sshll.u32 [#allocation5], 4
      %s29 = int_to_ptr.vmem [resolvable:$true] %s28
      %34 = dma.hbm_to_vmem [thread:$0]  %s27, 4096, %s29, [#allocation6], 512, 512, 32
    $region9: #{tpu_custom_call.1} parent=1 // pred_fallthru
      _
    // Predicated region
    $region10: #{tpu_custom_call.1} parent=1 // pred_check
      _
    $region11: #{tpu_custom_call.1} parent=1 // pred_check_branch
      %36 = sbr.rel (0) target = $region13
    $region12: #{tpu_custom_call.1} parent=1 // pred_region
      %38 = vsyncadd [#allocation6], 0
      %s40 = sshll.u32 %s2, 4
      %s41 = int_to_ptr.hbm [resolvable:$true] %s40
      %s42 = sshll.u32 [#allocation7], 4
      %s43 = int_to_ptr.vmem [resolvable:$true] %s42
      %45 = dma.hbm_to_vmem [thread:$0]  %s41, 64, %s43, [#allocation6]
    $region13: #{tpu_custom_call.1} parent=1 // pred_fallthru
      _
    // Predicated region
    $region14: #{tpu_custom_call.1} parent=1 // pred_check
      _
    $region15: #{tpu_custom_call.1} parent=1 // pred_check_branch
      %47 = sbr.rel (0) target = $region17
    $region16: #{tpu_custom_call.1} parent=1 // pred_region
      %49 = dma.done [#allocation3], 16
    $region17: #{tpu_custom_call.1} parent=1 // pred_fallthru
      _
    // Predicated region
    $region18: #{tpu_custom_call.1} parent=1 // pred_check
      _
    $region19: #{tpu_custom_call.1} parent=1 // pred_check_branch
      %51 = sbr.rel (0) target = $region21
    $region20: #{tpu_custom_call.1} parent=1 // pred_region
      %53 = dma.done [#allocation6], 4096
    $region21: #{tpu_custom_call.1} parent=1 // pred_fallthru
      _
    // Predicated region
    $region22: #{tpu_custom_call.1} parent=1 // pred_check
      _
    $region23: #{tpu_custom_call.1} parent=1 // pred_check_branch
      %55 = sbr.rel (0) target = $region25
    $region24: #{tpu_custom_call.1} parent=1 // pred_region
      %57 = dma.done [#allocation6], 64
    $region25: #{tpu_custom_call.1} parent=1 // pred_fallthru
      _
    %v58 = vld [vmem:[#allocation2] sm:$0x1]
    %v59 = vld [vmem:[#allocation5] sm:$0xff]
    %v60 = vld [vmem:[#allocation5 + $0x8] sm:$0xff]
    %v61 = vld [vmem:[#allocation5 + $0x10] sm:$0xff]
    %v62 = vld [vmem:[#allocation5 + $0x18] sm:$0xff]
    %v63 = vld [vmem:[#allocation5 + $0x20] sm:$0xff]
    %v64 = vld [vmem:[#allocation5 + $0x28] sm:$0xff]
    %v65 = vld [vmem:[#allocation5 + $0x30] sm:$0xff]
    %v66 = vld [vmem:[#allocation5 + $0x38] sm:$0xff]
    %v67 = vld [vmem:[#allocation5 + $0x40] sm:$0xff]
    %v68 = vld [vmem:[#allocation5 + $0x48] sm:$0xff]
    %v69 = vld [vmem:[#allocation5 + $0x50] sm:$0xff]
    %v70 = vld [vmem:[#allocation5 + $0x58] sm:$0xff]
    %v71 = vld [vmem:[#allocation5 + $0x60] sm:$0xff]
    %v72 = vld [vmem:[#allocation5 + $0x68] sm:$0xff]
    %v73 = vld [vmem:[#allocation5 + $0x70] sm:$0xff]
    %v74 = vld [vmem:[#allocation5 + $0x78] sm:$0xff]
    %v75 = vld [vmem:[#allocation5 + $0x80] sm:$0xff]
    %v76 = vld [vmem:[#allocation5 + $0x88] sm:$0xff]
    %v77 = vld [vmem:[#allocation5 + $0x90] sm:$0xff]
    %v78 = vld [vmem:[#allocation5 + $0x98] sm:$0xff]
    %v79 = vld [vmem:[#allocation5 + $0xa0] sm:$0xff]
    %v80 = vld [vmem:[#allocation5 + $0xa8] sm:$0xff]
    %v81 = vld [vmem:[#allocation5 + $0xb0] sm:$0xff]
    %v82 = vld [vmem:[#allocation5 + $0xb8] sm:$0xff]
    %v83 = vld [vmem:[#allocation5 + $0xc0] sm:$0xff]
    %v84 = vld [vmem:[#allocation5 + $0xc8] sm:$0xff]
    %v85 = vld [vmem:[#allocation5 + $0xd0] sm:$0xff]
    %v86 = vld [vmem:[#allocation5 + $0xd8] sm:$0xff]
    %v87 = vld [vmem:[#allocation5 + $0xe0] sm:$0xff]
    %v88 = vld [vmem:[#allocation5 + $0xe8] sm:$0xff]
    %v89 = vld [vmem:[#allocation5 + $0xf0] sm:$0xff]
    %v90 = vld [vmem:[#allocation5 + $0xf8] sm:$0xff]
    %v91 = vld [vmem:[#allocation7] sm:$0xf]
    %v93 = vperm.slane %v91, 0
    %v94 = vperm.slane %v91, 1
    %v95 = vperm.slane %v91, 2
    %v96 = vperm.slane %v91, 3
    %vm101 = vcmask 523264
    %v103 = vsel %vm101, %v58, 0
    %105 = vmatpush.msra.mxu0 0.0
    %106 = vmatpush.msra.mxu0 0.0
    %107 = vmatpush.msra.mxu0 0.0
    %108 = vmatpush.msra.mxu0 0.0
    %109 = vmatpush.msra.mxu0 0.0
    %110 = vmatpush.msra.mxu0 0.0
    %111 = vmatpush.msra.mxu0 0.0
    %112 = vmatpush.msra.mxu0 0.0
    %113 = vmatpush.msra.mxu0 %v87
    %114 = vmatpush.msra.mxu0 %v83
    %115 = vmatpush.msra.mxu0 %v79
    %116 = vmatpush.msra.mxu0 %v75
    %117 = vmatpush.msra.mxu0 %v71
    %118 = vmatpush.msra.mxu0 %v67
    %119 = vmatpush.msra.mxu0 %v63
    %120 = vmatpush.msra.mxu0 %v59
    %121 = vmatmul.f32.gmra.mxu0 %v103
    %v122 = vpop.f32.mrf.mxu0
    %v123 = vadd.f32 %v93, %v122
    %124 = vdwg.mxu0
    %125 = vmatpush.msra.mxu0 0.0
    %126 = vmatpush.msra.mxu0 0.0
    %127 = vmatpush.msra.mxu0 0.0
    %128 = vmatpush.msra.mxu0 0.0
    %129 = vmatpush.msra.mxu0 0.0
    %130 = vmatpush.msra.mxu0 0.0
    %131 = vmatpush.msra.mxu0 0.0
    %132 = vmatpush.msra.mxu0 0.0
    %133 = vmatpush.msra.mxu0 %v88
    %134 = vmatpush.msra.mxu0 %v84
    %135 = vmatpush.msra.mxu0 %v80
    %136 = vmatpush.msra.mxu0 %v76
    %137 = vmatpush.msra.mxu0 %v72
    %138 = vmatpush.msra.mxu0 %v68
    %139 = vmatpush.msra.mxu0 %v64
    %140 = vmatpush.msra.mxu0 %v60
    %141 = vmatmul.f32.gmra.mxu0 %v103
    %v142 = vpop.f32.mrf.mxu0
    %v143 = vadd.f32 %v94, %v142
    %144 = vdwg.mxu0
    %145 = vmatpush.msra.mxu0 0.0
    %146 = vmatpush.msra.mxu0 0.0
    %147 = vmatpush.msra.mxu0 0.0
    %148 = vmatpush.msra.mxu0 0.0
    %149 = vmatpush.msra.mxu0 0.0
    %150 = vmatpush.msra.mxu0 0.0
    %151 = vmatpush.msra.mxu0 0.0
    %152 = vmatpush.msra.mxu0 0.0
    %153 = vmatpush.msra.mxu0 %v89
    %154 = vmatpush.msra.mxu0 %v85
    %155 = vmatpush.msra.mxu0 %v81
    %156 = vmatpush.msra.mxu0 %v77
    %157 = vmatpush.msra.mxu0 %v73
    %158 = vmatpush.msra.mxu0 %v69
    %159 = vmatpush.msra.mxu0 %v65
    %160 = vmatpush.msra.mxu0 %v61
    %161 = vmatmul.f32.gmra.mxu0 %v103
    %v162 = vpop.f32.mrf.mxu0
    %v163 = vadd.f32 %v95, %v162
    %164 = vdwg.mxu0
    %165 = vmatpush.msra.mxu0 0.0
    %166 = vmatpush.msra.mxu0 0.0
    %167 = vmatpush.msra.mxu0 0.0
    %168 = vmatpush.msra.mxu0 0.0
    %169 = vmatpush.msra.mxu0 0.0
    %170 = vmatpush.msra.mxu0 0.0
    %171 = vmatpush.msra.mxu0 0.0
    %172 = vmatpush.msra.mxu0 0.0
    %173 = vmatpush.msra.mxu0 %v90
    %174 = vmatpush.msra.mxu0 %v86
    %175 = vmatpush.msra.mxu0 %v82
    %176 = vmatpush.msra.mxu0 %v78
    %177 = vmatpush.msra.mxu0 %v74
    %178 = vmatpush.msra.mxu0 %v70
    %179 = vmatpush.msra.mxu0 %v66
    %180 = vmatpush.msra.mxu0 %v62
    %181 = vmatmul.f32.gmra.mxu0 %v103
    %v182 = vpop.f32.mrf.mxu0
    %v183 = vadd.f32 %v96, %v182
    %184 = vdwg.mxu0
    %v189 = vrot.slane %v143, 7
    %v190 = vrot.slane %v163, 6
    %v191 = vrot.slane %v183, 5
    %vm192 = vcmask 1040384
    %v193 = vsel %vm192, %v123, %v189
    %vm194 = vcmask 1042434
    %v195 = vsel %vm194, %v190, %v191
    %vm196 = vcmask 1041408
    %v197 = vsel %vm196, %v193, %v195
    %v199 = vlaneseq
    %vm200 = vcmp.ge.s32.totalorder %v199, 0
    %vm201 = vcmp.lt.s32.totalorder %v199, 512
    %vm202 = vmand %vm200, %vm201
    %203 = vst.msk [vmem:[#allocation8] sm:$0xf] %vm202, %v197
    // Predicated region
    $region26: #{tpu_custom_call.1} parent=1 // pred_check
      _
    $region27: #{tpu_custom_call.1} parent=1 // pred_check_branch
      %205 = sbr.rel (0) target = $region29
    $region28: #{tpu_custom_call.1} parent=1 // pred_region
      %207 = vsyncadd [#allocation4], 0
      %s209 = sshll.u32 [#allocation8], 4
      %s210 = int_to_ptr.vmem [resolvable:$true] %s209
      %s211 = sshll.u32 %s3, 4
      %s212 = int_to_ptr.hbm [resolvable:$true] %s211
      %214 = dma.vmem_to_hbm [thread:$0]  %s210, 64, %s212, [#allocation4]
    $region29: #{tpu_custom_call.1} parent=1 // pred_fallthru
      _
    // Predicated region
    $region30: #{tpu_custom_call.1} parent=1 // pred_check
      _
    $region31: #{tpu_custom_call.1} parent=1 // pred_check_branch
      %216 = sbr.rel (0) target = $region33
    $region32: #{tpu_custom_call.1} parent=1 // pred_region
      %218 = dma.done [#allocation4], 64
    $region33: #{tpu_custom_call.1} parent=1 // pred_fallthru
      _
    %219 = vsyncpa [#allocation3], 1
    %220 = vsyncpa [#allocation6], 1
    %221 = vsyncpa [#allocation4], 1

</llo_original>
